<compile_context>
chip_gen: v7x
topology: tpu7x:2x2x1
jax: 0.10.0
libtpu: 0.0.40
codegen_flags: <defaults>
</compile_context>

<pallas_src>
import functools

import jax
import jax.numpy as jnp
from jax.experimental import pallas as pl
from jax.experimental.pallas import tpu as pltpu


# ----------------------------------------------------------------------------
# Pallas kernel: fused forward chain for one batch tile.
# ----------------------------------------------------------------------------
def _latent_tf_kernel(
    x_ref, ep_ref,
    w1_ref, b1_ref,            # encoder layer 0 (BN folded), zero rows for batch_id cols
    wml_ref, bml_ref,          # fused [mu | logvar] head (BN folded)
    wdz_ref, wdp_ref, bd_ref,  # decoder layer 0 split: rows for z / rows for prior
    wr_ref, br_ref,            # ReconsPredictor ([H, n_genes] or [1, H] single-gene row)
    o_ref,
    *, latent_dim, single_output,
):
    f32 = jnp.float32
    bf16 = jnp.bfloat16
    L = latent_dim

    # Encoder hidden: Linear(+BN folded) -> ReLU   (Dropout = identity in eval)
    x = x_ref[...]
    if x.dtype != bf16:
        x = x.astype(bf16)
    h = jnp.dot(x, w1_ref[...], preferred_element_type=f32) + b1_ref[...]
    h = jnp.maximum(h, 0.0).astype(bf16)

    # Fused mu/logvar heads: one [tb,256] @ [256, 2*L] matmul, split lanes.
    ml = jnp.dot(h, wml_ref[...], preferred_element_type=f32) + bml_ref[...]
    mu = ml[:, :L]
    lv = ml[:, L:]

    # Fused [eps | prior_z] stream (f32); reparameterize stays in f32.
    # TODO(synk): tail-tile padding rows (B % tb != 0) run exp() on undefined
    # data; harmless on HW (masked output writeback) but visible in interpret mode.
    ep = ep_ref[...]
    eps = ep[:, :L]
    prior = ep[:, L:]
    z = eps * jnp.exp(lv * 0.5) + mu

    # Decoder hidden on concat([z, prior_z, 0*batch_id]) realized as a split
    # matmul (no in-kernel lane concat; zero batch_id block dropped algebraically).
    d = (jnp.dot(z.astype(bf16), wdz_ref[...], preferred_element_type=f32)
         + jnp.dot(prior.astype(bf16), wdp_ref[...], preferred_element_type=f32)
         + bd_ref[...])
    d = jnp.maximum(d, 0.0)

    # ReconsPredictor: plain Linear (no BN / activation; Dropout = identity).
    if single_output:
        # N = 1: VPU multiply + cross-lane reduce instead of a [tb,H]@[H,1] dot.
        wr = wr_ref[...].astype(f32)                      # [1, H]
        out = jnp.sum(d * wr, axis=-1, keepdims=True) + br_ref[...]
    else:
        out = jnp.dot(d.astype(bf16), wr_ref[...], preferred_element_type=f32) + br_ref[...]
    o_ref[...] = out.astype(o_ref.dtype)


# ----------------------------------------------------------------------------
# Batch-tile choice: big tiles to amortize grid overhead; >=2 grid steps when
# B exceeds the cap so v7x's two TensorCores both get work on the parallel axis.
# ----------------------------------------------------------------------------
def _choose_batch_tile(B, max_tile=1024):
    if B <= max_tile:
        return B
    half = -(-B // 2)                 # cdiv(B, 2)
    half = -(-half // 8) * 8          # round up to sublane multiple
    return min(max_tile, half)


# ----------------------------------------------------------------------------
# Wrapper
# ----------------------------------------------------------------------------
def explain_model_latent_tf_forward(x, params, *, eps, prior_z, latent_dim,
                                    dimension_num=None, out_dtype=jnp.float32,
                                    max_batch_tile=1024):
    """x = [TF_embedding | batch_id]  (full width; batch_id cols hit zero W1 rows).

    For best HBM traffic pass x already in bf16 (it is consumed in bf16 at the
    MXU boundary regardless); out_dtype=jnp.bfloat16 additionally halves the
    output writeback if the downstream consumer tolerates it.
    """
    B, in_dim = x.shape
    if x.dtype != jnp.bfloat16:
        x = x.astype(jnp.bfloat16)

    # One lane-dense [B, 2L] buffer for the two 16-lane random streams.
    ep = jnp.concatenate(
        [eps.astype(jnp.float32), prior_z.astype(jnp.float32)], axis=1)

    wr = params["wr"]
    br = params["br"]
    single_output = dimension_num is not None
    if single_output:
        # Compute only the requested gene: slice the weight, not the output.
        wr = wr[:, dimension_num].reshape(1, -1)          # [1, dec_hidden]
        br = br[:, dimension_num].reshape(1, 1)           # [1, 1]
        n_out = 1
    else:
        n_out = wr.shape[1]

    enc_hidden = params["w1"].shape[1]
    dec_hidden = params["wd_z"].shape[1]

    tb = _choose_batch_tile(B, max_batch_tile)
    grid = (pl.cdiv(B, tb),)

    def row_spec(n):
        return pl.BlockSpec((tb, n), lambda i: (i, 0))

    def full_spec(a):
        return pl.BlockSpec(a.shape, lambda i: (0,) * a.ndim)

    inputs = (
        x, ep,
        params["w1"], params["b1"],
        params["wml"], params["bml"],
        params["wd_z"], params["wd_p"], params["bd"],
        wr, br,
    )
    in_specs = [row_spec(in_dim), row_spec(2 * latent_dim)]
    in_specs += [full_spec(a) for a in inputs[2:]]

    # Advisory cost estimate for XLA's scheduler around the custom call.
    flops = 2 * B * (in_dim * enc_hidden
                     + enc_hidden * 2 * latent_dim
                     + 2 * latent_dim * dec_hidden
                     + dec_hidden * n_out)
    weight_bytes = sum(int(a.size) * a.dtype.itemsize for a in inputs[2:])
    bytes_accessed = (int(x.size) * x.dtype.itemsize
                      + int(ep.size) * 4
                      + weight_bytes
                      + B * n_out * jnp.dtype(out_dtype).itemsize)

    compiler_kwargs = dict(dimension_semantics=("parallel",))
    if tb >= 2048:
        # Only needed if the tile cap is raised past 1024 (v5e scoped-VMEM default).
        compiler_kwargs["vmem_limit_bytes"] = 64 * 1024 * 1024

    out = pl.pallas_call(
        functools.partial(_latent_tf_kernel, latent_dim=latent_dim,
                          single_output=single_output),
        out_shape=jax.ShapeDtypeStruct((B, n_out), out_dtype),
        grid=grid,
        in_specs=in_specs,
        out_specs=row_spec(n_out),
        compiler_params=pltpu.CompilerParams(**compiler_kwargs),
        cost_estimate=pl.CostEstimate(
            flops=int(flops),
            transcendentals=int(B * latent_dim),
            bytes_accessed=int(bytes_accessed)),
    )(*inputs)
    return out


# ----------------------------------------------------------------------------
# Deterministic parameter construction: kaiming-normal Linear weights, zero
# biases, default BatchNorm1d running stats folded into the Linear (eval mode).
# ----------------------------------------------------------------------------
def _kaiming(key, fan_in, fan_out):
    # kaiming_normal_(nonlinearity='relu'): std = sqrt(2 / fan_in); torch stores [out,in]
    w = jax.random.normal(key, (fan_out, fan_in), jnp.float32) * jnp.sqrt(2.0 / fan_in)
    return w.T  # [in, out] for x @ W layout


def _bn_fold(w, b, out_dim, eps=1e-5):
    # Default BN1d: gamma=1, beta=0, running_mean=0, running_var=1 (eval mode).
    # TODO(synk): fold real checkpoint running stats here when loading trained weights.
    gamma = jnp.ones((out_dim,), jnp.float32)
    beta = jnp.zeros((out_dim,), jnp.float32)
    mean = jnp.zeros((out_dim,), jnp.float32)
    var = jnp.ones((out_dim,), jnp.float32)
    scale = gamma / jnp.sqrt(var + eps)
    shift = beta - mean * scale
    return w * scale[None, :], b * scale + shift


def make_params(key, *, tf_dim=514, enc_hidden=256, latent_dim=16,
                dec_hidden=128, n_genes=256, batch_dims=2):
    keys = jax.random.split(key, 5)
    bf16 = jnp.bfloat16

    # Encoder layer 0 (Linear + BN folded).  Zero-pad batch_dims extra rows so
    # the kernel can consume the full [B, 514+batch_dims] x without slicing.
    w1 = _kaiming(keys[0], tf_dim, enc_hidden)
    b1 = jnp.zeros((enc_hidden,), jnp.float32)
    w1, b1 = _bn_fold(w1, b1, enc_hidden)
    w1 = jnp.concatenate(
        [w1, jnp.zeros((batch_dims, enc_hidden), jnp.float32)], axis=0)

    # mu / logvar heads (Linear + BN folded), fused along the output axis.
    wmu = _kaiming(keys[1], enc_hidden, latent_dim)
    bmu = jnp.zeros((latent_dim,), jnp.float32)
    wmu, bmu = _bn_fold(wmu, bmu, latent_dim)
    wlv = _kaiming(keys[2], enc_hidden, latent_dim)
    blv = jnp.zeros((latent_dim,), jnp.float32)
    wlv, blv = _bn_fold(wlv, blv, latent_dim)
    wml = jnp.concatenate([wmu, wlv], axis=1)          # [enc_hidden, 2*latent]
    bml = jnp.concatenate([bmu, blv], axis=0)

    # RNADecoder layer 0: input = latent*2 + batch_dims; batch_dims rows always
    # multiply zeros, so keep only the [z | prior] rows (drawn from the full
    # matrix for fidelity).  BN folded, then split into the z-rows / prior-rows
    # so the kernel never has to stitch a [z | prior] concat.
    wd_full = _kaiming(keys[3], 2 * latent_dim + batch_dims, dec_hidden)
    wd = wd_full[:2 * latent_dim, :]
    bd = jnp.zeros((dec_hidden,), jnp.float32)
    wd, bd = _bn_fold(wd, bd, dec_hidden)
    wd_z = wd[:latent_dim, :]
    wd_p = wd[latent_dim:, :]

    # ReconsPredictor: plain Linear.
    wr = _kaiming(keys[4], dec_hidden, n_genes)
    br = jnp.zeros((n_genes,), jnp.float32)

    return dict(
        w1=w1.astype(bf16), b1=b1[None, :],
        wml=wml.astype(bf16), bml=bml[None, :],
        wd_z=wd_z.astype(bf16), wd_p=wd_p.astype(bf16), bd=bd[None, :],
        wr=wr.astype(bf16), br=br[None, :],
    )


if __name__ == "__main__":
    key = jax.random.PRNGKey(0)
    k_param, k_x, k_eps, k_prior = jax.random.split(key, 4)

    B = 8
    TF_DIM = 514          # hard-coded in explainModelLatentTF.forward
    BATCH_DIMS = 2
    LATENT_DIM = 16
    N_GENES = 256
    DIMENSION_NUM = 3

    params = make_params(
        k_param, tf_dim=TF_DIM, enc_hidden=256, latent_dim=LATENT_DIM,
        dec_hidden=128, n_genes=N_GENES, batch_dims=BATCH_DIMS)

    # Input x = [TF_embedding | batch_id]  (batch_id is zeroed inside the model).
    # Provided in bf16: it is consumed at that precision by the MXU anyway.
    x = jax.random.normal(
        k_x, (B, TF_DIM + BATCH_DIMS), jnp.float32).astype(jnp.bfloat16)

    # Randomness of reparameterize() and prior_z (torch.randn_like) generated
    # deterministically here and passed into the kernel.
    eps = jax.random.normal(k_eps, (B, LATENT_DIM), jnp.float32)
    prior_z = jax.random.normal(k_prior, (B, LATENT_DIM), jnp.float32)

    fwd = functools.partial(explain_model_latent_tf_forward,
                            latent_dim=LATENT_DIM)

    # Full-gene reconstruction (bf16 output halves the writeback traffic).
    out_full = jax.block_until_ready(
        fwd(x, params, eps=eps, prior_z=prior_z, out_dtype=jnp.bfloat16))
    # Single-gene explainer path (dimension_num), f32 output.
    out_dim = jax.block_until_ready(
        fwd(x, params, eps=eps, prior_z=prior_z, dimension_num=DIMENSION_NUM))

    assert out_full.shape == (B, N_GENES) and out_full.dtype == jnp.bfloat16
    assert out_dim.shape == (B, 1) and out_dim.dtype == jnp.float32
    assert bool(jnp.all(jnp.isfinite(out_full.astype(jnp.float32))))
    assert bool(jnp.all(jnp.isfinite(out_dim)))
    # TODO(synk): training-mode BatchNorm batch-stats / Dropout sampling not
    # implemented; eval-mode semantics are used (standard for explainers).
    print("KERNEL_OK")
</pallas_src>

<mosaic_0001>
module attributes {stable_mosaic.version = 11 : i64} {
  func.func @_latent_tf_kernel(%arg0: i32, %arg1: memref<8x516xbf16, #tpu.memory_space<vmem>>, %arg2: memref<8x32xf32, #tpu.memory_space<vmem>>, %arg3: memref<516x256xbf16, #tpu.memory_space<vmem>>, %arg4: memref<1x256xf32, #tpu.memory_space<vmem>>, %arg5: memref<256x32xbf16, #tpu.memory_space<vmem>>, %arg6: memref<1x32xf32, #tpu.memory_space<vmem>>, %arg7: memref<16x128xbf16, #tpu.memory_space<vmem>>, %arg8: memref<16x128xbf16, #tpu.memory_space<vmem>>, %arg9: memref<1x128xf32, #tpu.memory_space<vmem>>, %arg10: memref<128x256xbf16, #tpu.memory_space<vmem>>, %arg11: memref<1x256xf32, #tpu.memory_space<vmem>>, %arg12: memref<8x256xbf16, #tpu.memory_space<vmem>>) attributes {dimension_semantics = [#tpu.dimension_semantics<parallel>], iteration_bounds = array<i64: 1>, scalar_prefetch = 0 : i64, scratch_operands = 0 : i64, tpu.core_type = #tpu.core_type<tc>, window_params = [{transform_indices = @transform_0, window_bounds = array<i64: 8, 516>}, {transform_indices = @transform_1, window_bounds = array<i64: 8, 32>}, {pipeline_mode = #tpu.pipeline_mode<synchronous>, transform_indices = @transform_2, window_bounds = array<i64: 516, 256>}, {pipeline_mode = #tpu.pipeline_mode<synchronous>, transform_indices = @transform_3, window_bounds = array<i64: 1, 256>}, {pipeline_mode = #tpu.pipeline_mode<synchronous>, transform_indices = @transform_4, window_bounds = array<i64: 256, 32>}, {pipeline_mode = #tpu.pipeline_mode<synchronous>, transform_indices = @transform_5, window_bounds = array<i64: 1, 32>}, {pipeline_mode = #tpu.pipeline_mode<synchronous>, transform_indices = @transform_6, window_bounds = array<i64: 16, 128>}, {pipeline_mode = #tpu.pipeline_mode<synchronous>, transform_indices = @transform_7, window_bounds = array<i64: 16, 128>}, {pipeline_mode = #tpu.pipeline_mode<synchronous>, transform_indices = @transform_8, window_bounds = array<i64: 1, 128>}, {pipeline_mode = #tpu.pipeline_mode<synchronous>, transform_indices = @transform_9, window_bounds = array<i64: 128, 256>}, {pipeline_mode = #tpu.pipeline_mode<synchronous>, transform_indices = @transform_10, window_bounds = array<i64: 1, 256>}, {transform_indices = @transform_11, window_bounds = array<i64: 8, 256>}]} {
    %c0 = arith.constant 0 : index
    %c0_0 = arith.constant 0 : index
    %0 = vector.load %arg1[%c0, %c0_0] : memref<8x516xbf16, #tpu.memory_space<vmem>>, vector<8x516xbf16>
    %c0_1 = arith.constant 0 : index
    %c0_2 = arith.constant 0 : index
    %1 = vector.load %arg3[%c0_1, %c0_2] : memref<516x256xbf16, #tpu.memory_space<vmem>>, vector<516x256xbf16>
    %cst = arith.constant dense<0.000000e+00> : vector<8x256xf32>
    %2 = tpu.matmul %0, %1, %cst {dimension_numbers = #tpu.dot_dimension_numbers<[1], [0], [0], [1], [0, 0, 1, 1], [], []>} : vector<8x516xbf16>, vector<516x256xbf16>, vector<8x256xf32> -> vector<8x256xf32>
    %c0_3 = arith.constant 0 : index
    %c0_4 = arith.constant 0 : index
    %3 = vector.load %arg4[%c0_3, %c0_4] : memref<1x256xf32, #tpu.memory_space<vmem>>, vector<1x256xf32>
    %4 = vector.broadcast %3 : vector<1x256xf32> to vector<8x256xf32>
    %5 = arith.addf %2, %4 : vector<8x256xf32>
    %cst_5 = arith.constant 0.000000e+00 : f32
    %6 = vector.broadcast %cst_5 : f32 to vector<8x256xf32>
    %7 = arith.maximumf %5, %6 : vector<8x256xf32>
    %8 = arith.truncf %7 : vector<8x256xf32> to vector<8x256xbf16>
    %c0_6 = arith.constant 0 : index
    %c0_7 = arith.constant 0 : index
    %9 = vector.load %arg5[%c0_6, %c0_7] : memref<256x32xbf16, #tpu.memory_space<vmem>>, vector<256x32xbf16>
    %cst_8 = arith.constant dense<0.000000e+00> : vector<8x32xf32>
    %10 = tpu.matmul %8, %9, %cst_8 {dimension_numbers = #tpu.dot_dimension_numbers<[1], [0], [0], [1], [0, 0, 1, 1], [], []>} : vector<8x256xbf16>, vector<256x32xbf16>, vector<8x32xf32> -> vector<8x32xf32>
    %c0_9 = arith.constant 0 : index
    %c0_10 = arith.constant 0 : index
    %11 = vector.load %arg6[%c0_9, %c0_10] : memref<1x32xf32, #tpu.memory_space<vmem>>, vector<1x32xf32>
    %12 = vector.broadcast %11 : vector<1x32xf32> to vector<8x32xf32>
    %13 = arith.addf %10, %12 : vector<8x32xf32>
    %14 = vector.extract_strided_slice %13 {offsets = [0, 0], sizes = [8, 16], strides = [1, 1]} : vector<8x32xf32> to vector<8x16xf32>
    %15 = vector.extract_strided_slice %13 {offsets = [0, 16], sizes = [8, 16], strides = [1, 1]} : vector<8x32xf32> to vector<8x16xf32>
    %c0_11 = arith.constant 0 : index
    %c0_12 = arith.constant 0 : index
    %16 = vector.load %arg2[%c0_11, %c0_12] : memref<8x32xf32, #tpu.memory_space<vmem>>, vector<8x32xf32>
    %17 = vector.extract_strided_slice %16 {offsets = [0, 0], sizes = [8, 16], strides = [1, 1]} : vector<8x32xf32> to vector<8x16xf32>
    %18 = vector.extract_strided_slice %16 {offsets = [0, 16], sizes = [8, 16], strides = [1, 1]} : vector<8x32xf32> to vector<8x16xf32>
    %cst_13 = arith.constant 5.000000e-01 : f32
    %19 = vector.broadcast %cst_13 : f32 to vector<8x16xf32>
    %20 = arith.mulf %15, %19 : vector<8x16xf32>
    %21 = math.exp %20 : vector<8x16xf32>
    %22 = arith.mulf %17, %21 : vector<8x16xf32>
    %23 = arith.addf %22, %14 : vector<8x16xf32>
    %24 = arith.truncf %23 : vector<8x16xf32> to vector<8x16xbf16>
    %c0_14 = arith.constant 0 : index
    %c0_15 = arith.constant 0 : index
    %25 = vector.load %arg7[%c0_14, %c0_15] : memref<16x128xbf16, #tpu.memory_space<vmem>>, vector<16x128xbf16>
    %cst_16 = arith.constant dense<0.000000e+00> : vector<8x128xf32>
    %26 = tpu.matmul %24, %25, %cst_16 {dimension_numbers = #tpu.dot_dimension_numbers<[1], [0], [0], [1], [0, 0, 1, 1], [], []>} : vector<8x16xbf16>, vector<16x128xbf16>, vector<8x128xf32> -> vector<8x128xf32>
    %27 = arith.truncf %18 : vector<8x16xf32> to vector<8x16xbf16>
    %c0_17 = arith.constant 0 : index
    %c0_18 = arith.constant 0 : index
    %28 = vector.load %arg8[%c0_17, %c0_18] : memref<16x128xbf16, #tpu.memory_space<vmem>>, vector<16x128xbf16>
    %cst_19 = arith.constant dense<0.000000e+00> : vector<8x128xf32>
    %29 = tpu.matmul %27, %28, %cst_19 {dimension_numbers = #tpu.dot_dimension_numbers<[1], [0], [0], [1], [0, 0, 1, 1], [], []>} : vector<8x16xbf16>, vector<16x128xbf16>, vector<8x128xf32> -> vector<8x128xf32>
    %30 = arith.addf %26, %29 : vector<8x128xf32>
    %c0_20 = arith.constant 0 : index
    %c0_21 = arith.constant 0 : index
    %31 = vector.load %arg9[%c0_20, %c0_21] : memref<1x128xf32, #tpu.memory_space<vmem>>, vector<1x128xf32>
    %32 = vector.broadcast %31 : vector<1x128xf32> to vector<8x128xf32>
    %33 = arith.addf %30, %32 : vector<8x128xf32>
    %cst_22 = arith.constant 0.000000e+00 : f32
    %34 = vector.broadcast %cst_22 : f32 to vector<8x128xf32>
    %35 = arith.maximumf %33, %34 : vector<8x128xf32>
    %36 = arith.truncf %35 : vector<8x128xf32> to vector<8x128xbf16>
    %c0_23 = arith.constant 0 : index
    %c0_24 = arith.constant 0 : index
    %37 = vector.load %arg10[%c0_23, %c0_24] : memref<128x256xbf16, #tpu.memory_space<vmem>>, vector<128x256xbf16>
    %cst_25 = arith.constant dense<0.000000e+00> : vector<8x256xf32>
    %38 = tpu.matmul %36, %37, %cst_25 {dimension_numbers = #tpu.dot_dimension_numbers<[1], [0], [0], [1], [0, 0, 1, 1], [], []>} : vector<8x128xbf16>, vector<128x256xbf16>, vector<8x256xf32> -> vector<8x256xf32>
    %c0_26 = arith.constant 0 : index
    %c0_27 = arith.constant 0 : index
    %39 = vector.load %arg11[%c0_26, %c0_27] : memref<1x256xf32, #tpu.memory_space<vmem>>, vector<1x256xf32>
    %40 = vector.broadcast %39 : vector<1x256xf32> to vector<8x256xf32>
    %41 = arith.addf %38, %40 : vector<8x256xf32>
    %42 = arith.truncf %41 : vector<8x256xf32> to vector<8x256xbf16>
    %c0_28 = arith.constant 0 : index
    %c0_29 = arith.constant 0 : index
    %43 = vector.load %arg12[%c0_28, %c0_29] : memref<8x256xbf16, #tpu.memory_space<vmem>>, vector<8x256xbf16>
    tpu.vector_store %arg12[%c0_28, %c0_29], %42 {strides = array<i32>} : memref<8x256xbf16, #tpu.memory_space<vmem>>, vector<8x256xbf16>,
    return
  }
  func.func @transform_0(%arg0: i32) -> (i32, i32) {
    %c0_i32 = arith.constant 0 : i32
    %c0_i32_0 = arith.constant 0 : i32
    return %arg0, %c0_i32 : i32, i32
  }
  func.func @transform_1(%arg0: i32) -> (i32, i32) {
    %c0_i32 = arith.constant 0 : i32
    %c0_i32_0 = arith.constant 0 : i32
    return %arg0, %c0_i32 : i32, i32
  }
  func.func @transform_2(%arg0: i32) -> (i32, i32) {
    %c0_i32 = arith.constant 0 : i32
    %c0_i32_0 = arith.constant 0 : i32
    %c0_i32_1 = arith.constant 0 : i32
    return %c0_i32, %c0_i32_0 : i32, i32
  }
  func.func @transform_3(%arg0: i32) -> (i32, i32) {
    %c0_i32 = arith.constant 0 : i32
    %c0_i32_0 = arith.constant 0 : i32
    %c0_i32_1 = arith.constant 0 : i32
    return %c0_i32, %c0_i32_0 : i32, i32
  }
  func.func @transform_4(%arg0: i32) -> (i32, i32) {
    %c0_i32 = arith.constant 0 : i32
    %c0_i32_0 = arith.constant 0 : i32
    %c0_i32_1 = arith.constant 0 : i32
    return %c0_i32, %c0_i32_0 : i32, i32
  }
  func.func @transform_5(%arg0: i32) -> (i32, i32) {
    %c0_i32 = arith.constant 0 : i32
    %c0_i32_0 = arith.constant 0 : i32
    %c0_i32_1 = arith.constant 0 : i32
    return %c0_i32, %c0_i32_0 : i32, i32
  }
  func.func @transform_6(%arg0: i32) -> (i32, i32) {
    %c0_i32 = arith.constant 0 : i32
    %c0_i32_0 = arith.constant 0 : i32
    %c0_i32_1 = arith.constant 0 : i32
    return %c0_i32, %c0_i32_0 : i32, i32
  }
  func.func @transform_7(%arg0: i32) -> (i32, i32) {
    %c0_i32 = arith.constant 0 : i32
    %c0_i32_0 = arith.constant 0 : i32
    %c0_i32_1 = arith.constant 0 : i32
    return %c0_i32, %c0_i32_0 : i32, i32
  }
  func.func @transform_8(%arg0: i32) -> (i32, i32) {
    %c0_i32 = arith.constant 0 : i32
    %c0_i32_0 = arith.constant 0 : i32
    %c0_i32_1 = arith.constant 0 : i32
    return %c0_i32, %c0_i32_0 : i32, i32
  }
  func.func @transform_9(%arg0: i32) -> (i32, i32) {
    %c0_i32 = arith.constant 0 : i32
    %c0_i32_0 = arith.constant 0 : i32
    %c0_i32_1 = arith.constant 0 : i32
    return %c0_i32, %c0_i32_0 : i32, i32
  }
  func.func @transform_10(%arg0: i32) -> (i32, i32) {
    %c0_i32 = arith.constant 0 : i32
    %c0_i32_0 = arith.constant 0 : i32
    %c0_i32_1 = arith.constant 0 : i32
    return %c0_i32, %c0_i32_0 : i32, i32
  }
  func.func @transform_11(%arg0: i32) -> (i32, i32) {
    %c0_i32 = arith.constant 0 : i32
    %c0_i32_0 = arith.constant 0 : i32
    return %arg0, %c0_i32 : i32, i32
  }
}

</mosaic_0001>

<llo_original>
// kernel: tpu_custom_call.1
$region0: #{tpu_custom_call.1}
  #allocation0 [shape = 'u32[]', space=smem, size = 0x4, offset = 0x4, fixed_abs, tag = 'smem constant byte address 0x4 - core index']
  #allocation1 [shape = 'u32[144,128]{1,0:T(1,128)}', space=vmem, size = 0x12000, scoped, tag = 'internal scratch']
  %s0 = inlined_call_operand.vmem [shape: bf16[8,516], index: 0, kind: input, shape index: {}]
  %s1 = inlined_call_operand.vmem [shape: f32[8,32], index: 1, kind: input, shape index: {}]
  %s2 = inlined_call_operand.hbm [shape: bf16[516,256], index: 2, kind: input, shape index: {}]
  %s3 = inlined_call_operand.vmem [shape: f32[1,256], index: 3, kind: input, shape index: {}]
  %s4 = inlined_call_operand.vmem [shape: bf16[256,32], index: 4, kind: input, shape index: {}]
  %s5 = inlined_call_operand.vmem [shape: f32[1,32], index: 5, kind: input, shape index: {}]
  %s6 = inlined_call_operand.vmem [shape: bf16[16,128], index: 6, kind: input, shape index: {}]
  %s7 = inlined_call_operand.vmem [shape: bf16[16,128], index: 7, kind: input, shape index: {}]
  %s8 = inlined_call_operand.vmem [shape: f32[1,128], index: 8, kind: input, shape index: {}]
  %s9 = inlined_call_operand.vmem [shape: bf16[128,256], index: 9, kind: input, shape index: {}]
  %s10 = inlined_call_operand.vmem [shape: f32[1,256], index: 10, kind: input, shape index: {}]
  %s11 = inlined_call_operand.hbm [shape: bf16[8,256], index: 11, kind: output, shape index: {}]
  %s12 = sld [smem:[#allocation0]]
  $region58: #{tpu_custom_call.1} parent=0
    _
  %s14 = ssub.s32 1, %s12
  %s15 = scalar_select 0, %s14, %s12
  $region1: #{tpu_custom_call.1} parent=0
    #allocation2 [shape = 'u8[266240]{0}', space=vmem, size = 0x41000, scoped, tag = 'input window, operand 2, single buffered']
    #allocation3 [shape = 's32[1]{0}', space=sflag, size = 0x4, scoped, tag = 'scoped memory for tpu_custom_call.1']
    #allocation4 [shape = 's32[1]{0}', space=sflag, size = 0x4, scoped, tag = 'scoped memory for tpu_custom_call.1']
    #allocation5 [shape = 'u8[4096]{0}', space=vmem, size = 0x1000, scoped, tag = 'output window, operand 0, single buffered']
    %16 = vsyncpa [#allocation3], 0
    %17 = vsyncpa [#allocation4], 0
    // Predicated region
    $region2: #{tpu_custom_call.1} parent=1 // pred_check
      _
    $region3: #{tpu_custom_call.1} parent=1 // pred_check_branch
      %19 = sbr.rel (0) target = $region5
    $region4: #{tpu_custom_call.1} parent=1 // pred_region
      _
    $region5: #{tpu_custom_call.1} parent=1 // pred_fallthru
      _
    // Predicated region
    $region6: #{tpu_custom_call.1} parent=1 // pred_check
      _
    $region7: #{tpu_custom_call.1} parent=1 // pred_check_branch
      %21 = sbr.rel (0) target = $region9
    $region8: #{tpu_custom_call.1} parent=1 // pred_region
      _
    $region9: #{tpu_custom_call.1} parent=1 // pred_fallthru
      _
    // Predicated region
    $region10: #{tpu_custom_call.1} parent=1 // pred_check
      _
    $region11: #{tpu_custom_call.1} parent=1 // pred_check_branch
      %23 = sbr.rel (0) target = $region13
    $region12: #{tpu_custom_call.1} parent=1 // pred_region
      %s25 = ssub.s32 8320, 8320
      %26 = vsyncadd [#allocation3], %s25
      %s27 = sshll.u32 [#allocation2], 4
      %s28 = int_to_ptr.vmem [resolvable:$true] %s27
      %33 = dma.hbm_to_vmem [thread:$0]  %s2, 8320, %s28, [#allocation3], 128, 128, 8
    $region13: #{tpu_custom_call.1} parent=1 // pred_fallthru
      _
    // Predicated region
    $region14: #{tpu_custom_call.1} parent=1 // pred_check
      _
    $region15: #{tpu_custom_call.1} parent=1 // pred_check_branch
      %35 = sbr.rel (0) target = $region17
    $region16: #{tpu_custom_call.1} parent=1 // pred_region
      _
    $region17: #{tpu_custom_call.1} parent=1 // pred_fallthru
      _
    // Predicated region
    $region18: #{tpu_custom_call.1} parent=1 // pred_check
      _
    $region19: #{tpu_custom_call.1} parent=1 // pred_check_branch
      %37 = sbr.rel (0) target = $region21
    $region20: #{tpu_custom_call.1} parent=1 // pred_region
      _
    $region21: #{tpu_custom_call.1} parent=1 // pred_fallthru
      _
    // Predicated region
    $region22: #{tpu_custom_call.1} parent=1 // pred_check
      _
    $region23: #{tpu_custom_call.1} parent=1 // pred_check_branch
      %39 = sbr.rel (0) target = $region25
    $region24: #{tpu_custom_call.1} parent=1 // pred_region
      _
    $region25: #{tpu_custom_call.1} parent=1 // pred_fallthru
      _
    // Predicated region
    $region26: #{tpu_custom_call.1} parent=1 // pred_check
      _
    $region27: #{tpu_custom_call.1} parent=1 // pred_check_branch
      %41 = sbr.rel (0) target = $region29
    $region28: #{tpu_custom_call.1} parent=1 // pred_region
      _
    $region29: #{tpu_custom_call.1} parent=1 // pred_fallthru
      _
    // Predicated region
    $region30: #{tpu_custom_call.1} parent=1 // pred_check
      _
    $region31: #{tpu_custom_call.1} parent=1 // pred_check_branch
      %43 = sbr.rel (0) target = $region33
    $region32: #{tpu_custom_call.1} parent=1 // pred_region
      _
    $region33: #{tpu_custom_call.1} parent=1 // pred_fallthru
      _
    // Predicated region
    $region34: #{tpu_custom_call.1} parent=1 // pred_check
      _
    $region35: #{tpu_custom_call.1} parent=1 // pred_check_branch
      %45 = sbr.rel (0) target = $region37
    $region36: #{tpu_custom_call.1} parent=1 // pred_region
      _
    $region37: #{tpu_custom_call.1} parent=1 // pred_fallthru
      _
    // Predicated region
    $region38: #{tpu_custom_call.1} parent=1 // pred_check
      _
    $region39: #{tpu_custom_call.1} parent=1 // pred_check_branch
      %47 = sbr.rel (0) target = $region41
    $region40: #{tpu_custom_call.1} parent=1 // pred_region
      _
    $region41: #{tpu_custom_call.1} parent=1 // pred_fallthru
      _
    // Predicated region
    $region42: #{tpu_custom_call.1} parent=1 // pred_check
      _
    $region43: #{tpu_custom_call.1} parent=1 // pred_check_branch
      %49 = sbr.rel (0) target = $region45
    $region44: #{tpu_custom_call.1} parent=1 // pred_region
      _
    $region45: #{tpu_custom_call.1} parent=1 // pred_fallthru
      _
    // Predicated region
    $region46: #{tpu_custom_call.1} parent=1 // pred_check
      _
    $region47: #{tpu_custom_call.1} parent=1 // pred_check_branch
      %51 = sbr.rel (0) target = $region49
    $region48: #{tpu_custom_call.1} parent=1 // pred_region
      %52 = dma.done [#allocation3], 8320
    $region49: #{tpu_custom_call.1} parent=1 // pred_fallthru
      _
    %v54 = vld [vmem:[%s0] sm:$0xff]
    %v55 = vld [vmem:[%s0 + $0x8] sm:$0xff]
    %v56 = vld [vmem:[%s0 + $0x10] sm:$0xf]
    %v57 = vld [vmem:[#allocation2] sm:$0xff]
    %v58 = vld [vmem:[#allocation2 + $0x8] sm:$0xff]
    %v59 = vld [vmem:[#allocation2 + $0x10] sm:$0xff]
    %v60 = vld [vmem:[#allocation2 + $0x18] sm:$0xff]
    %v61 = vld [vmem:[#allocation2 + $0x20] sm:$0xff]
    %v62 = vld [vmem:[#allocation2 + $0x28] sm:$0xff]
    %v63 = vld [vmem:[#allocation2 + $0x30] sm:$0xff]
    %v64 = vld [vmem:[#allocation2 + $0x38] sm:$0xff]
    %v65 = vld [vmem:[#allocation2 + $0x40] sm:$0xff]
    %v66 = vld [vmem:[#allocation2 + $0x48] sm:$0xff]
    %v67 = vld [vmem:[#allocation2 + $0x50] sm:$0xff]
    %v68 = vld [vmem:[#allocation2 + $0x58] sm:$0xff]
    %v69 = vld [vmem:[#allocation2 + $0x60] sm:$0xff]
    %v70 = vld [vmem:[#allocation2 + $0x68] sm:$0xff]
    %v71 = vld [vmem:[#allocation2 + $0x70] sm:$0xff]
    %v72 = vld [vmem:[#allocation2 + $0x78] sm:$0xff]
    %v73 = vld [vmem:[#allocation2 + $0x80] sm:$0xff]
    %v74 = vld [vmem:[#allocation2 + $0x88] sm:$0xff]
    %v75 = vld [vmem:[#allocation2 + $0x90] sm:$0xff]
    %v76 = vld [vmem:[#allocation2 + $0x98] sm:$0xff]
    %v77 = vld [vmem:[#allocation2 + $0xa0] sm:$0xff]
    %v78 = vld [vmem:[#allocation2 + $0xa8] sm:$0xff]
    %v79 = vld [vmem:[#allocation2 + $0xb0] sm:$0xff]
    %v80 = vld [vmem:[#allocation2 + $0xb8] sm:$0xff]
    %v81 = vld [vmem:[#allocation2 + $0xc0] sm:$0xff]
    %v82 = vld [vmem:[#allocation2 + $0xc8] sm:$0xff]
    %v83 = vld [vmem:[#allocation2 + $0xd0] sm:$0xff]
    %v84 = vld [vmem:[#allocation2 + $0xd8] sm:$0xff]
    %v85 = vld [vmem:[#allocation2 + $0xe0] sm:$0xff]
    %v86 = vld [vmem:[#allocation2 + $0xe8] sm:$0xff]
    %v87 = vld [vmem:[#allocation2 + $0xf0] sm:$0xff]
    %v88 = vld [vmem:[#allocation2 + $0xf8] sm:$0xff]
    %v89 = vld [vmem:[#allocation2 + $0x100] sm:$0xff]
    %v90 = vld [vmem:[#allocation2 + $0x108] sm:$0xff]
    %v91 = vld [vmem:[#allocation2 + $0x110] sm:$0xff]
    %v92 = vld [vmem:[#allocation2 + $0x118] sm:$0xff]
    %v93 = vld [vmem:[#allocation2 + $0x120] sm:$0xff]
    %v94 = vld [vmem:[#allocation2 + $0x128] sm:$0xff]
    %v95 = vld [vmem:[#allocation2 + $0x130] sm:$0xff]
    %v96 = vld [vmem:[#allocation2 + $0x138] sm:$0xff]
    %v97 = vld [vmem:[#allocation2 + $0x140] sm:$0xff]
    %v98 = vld [vmem:[#allocation2 + $0x148] sm:$0xff]
    %v99 = vld [vmem:[#allocation2 + $0x150] sm:$0xff]
    %v100 = vld [vmem:[#allocation2 + $0x158] sm:$0xff]
    %v101 = vld [vmem:[#allocation2 + $0x160] sm:$0xff]
    %v102 = vld [vmem:[#allocation2 + $0x168] sm:$0xff]
    %v103 = vld [vmem:[#allocation2 + $0x170] sm:$0xff]
    %v104 = vld [vmem:[#allocation2 + $0x178] sm:$0xff]
    %v105 = vld [vmem:[#allocation2 + $0x180] sm:$0xff]
    %v106 = vld [vmem:[#allocation2 + $0x188] sm:$0xff]
    %v107 = vld [vmem:[#allocation2 + $0x190] sm:$0xff]
    %v108 = vld [vmem:[#allocation2 + $0x198] sm:$0xff]
    %v109 = vld [vmem:[#allocation2 + $0x1a0] sm:$0xff]
    %v110 = vld [vmem:[#allocation2 + $0x1a8] sm:$0xff]
    %v111 = vld [vmem:[#allocation2 + $0x1b0] sm:$0xff]
    %v112 = vld [vmem:[#allocation2 + $0x1b8] sm:$0xff]
    %v113 = vld [vmem:[#allocation2 + $0x1c0] sm:$0xff]
    %v114 = vld [vmem:[#allocation2 + $0x1c8] sm:$0xff]
    %v115 = vld [vmem:[#allocation2 + $0x1d0] sm:$0xff]
    %v116 = vld [vmem:[#allocation2 + $0x1d8] sm:$0xff]
    %v117 = vld [vmem:[#allocation2 + $0x1e0] sm:$0xff]
    %v118 = vld [vmem:[#allocation2 + $0x1e8] sm:$0xff]
    %v119 = vld [vmem:[#allocation2 + $0x1f0] sm:$0xff]
    %v120 = vld [vmem:[#allocation2 + $0x1f8] sm:$0xff]
    %v121 = vld [vmem:[#allocation2 + $0x200] sm:$0x33]
    %v122 = vld [vmem:[%s3] sm:$0x3]
    %v124 = vlaneseq
    %v125 = vshrl.u32 %v124, 7
    %v126 = vsub.s32 0, %v125
    %v127 = vrot.slane %v122, %v126
    %v128 = vlaneseq
    %v129 = vshrl.u32 %v128, 7
    %v130 = vsub.s32 1, %v129
    %v131 = vrot.slane %v122, %v130
    %v137 = vunpack.c.l.b16 %v54
    %v138 = vunpack.c.h.b16 %v54
    %v139 = vunpack.c.l.b16 %v55
    %v140 = vunpack.c.h.b16 %v55
    %v141 = vunpack.c.l.b16 %v56
    %v142 = vpack.c.b16 %v137, %v137
    %v143 = vpack.c.b16 %v138, %v138
    %v144 = vpack.c.b16 %v139, %v139
    %v145 = vpack.c.b16 %v140, %v140
    %v146 = vpack.c.b16 %v141, %v141
    %v216 = vunpack.c.l.b16 %v57
    %v217 = vunpack.c.h.b16 %v57
    %v218 = vunpack.c.l.b16 %v58
    %v219 = vunpack.c.h.b16 %v58
    %v220 = vunpack.c.l.b16 %v59
    %v221 = vunpack.c.h.b16 %v59
    %v222 = vunpack.c.l.b16 %v60
    %v223 = vunpack.c.h.b16 %v60
    %v224 = vunpack.c.l.b16 %v61
    %v225 = vunpack.c.h.b16 %v61
    %v226 = vunpack.c.l.b16 %v62
    %v227 = vunpack.c.h.b16 %v62
    %v228 = vunpack.c.l.b16 %v63
    %v229 = vunpack.c.h.b16 %v63
    %v230 = vunpack.c.l.b16 %v64
    %v231 = vunpack.c.h.b16 %v64
    %v232 = vunpack.c.l.b16 %v65
    %v233 = vunpack.c.h.b16 %v65
    %v234 = vunpack.c.l.b16 %v66
    %v235 = vunpack.c.h.b16 %v66
    %v236 = vunpack.c.l.b16 %v67
    %v237 = vunpack.c.h.b16 %v67
    %v238 = vunpack.c.l.b16 %v68
    %v239 = vunpack.c.h.b16 %v68
    %v240 = vunpack.c.l.b16 %v69
    %v241 = vunpack.c.h.b16 %v69
    %v242 = vunpack.c.l.b16 %v70
    %v243 = vunpack.c.h.b16 %v70
    %v244 = vunpack.c.l.b16 %v71
    %v245 = vunpack.c.h.b16 %v71
    %v246 = vunpack.c.l.b16 %v72
    %v247 = vunpack.c.h.b16 %v72
    %v248 = vunpack.c.l.b16 %v73
    %v249 = vunpack.c.h.b16 %v73
    %v250 = vunpack.c.l.b16 %v74
    %v251 = vunpack.c.h.b16 %v74
    %v252 = vunpack.c.l.b16 %v75
    %v253 = vunpack.c.h.b16 %v75
    %v254 = vunpack.c.l.b16 %v76
    %v255 = vunpack.c.h.b16 %v76
    %v256 = vunpack.c.l.b16 %v77
    %v257 = vunpack.c.h.b16 %v77
    %v258 = vunpack.c.l.b16 %v78
    %v259 = vunpack.c.h.b16 %v78
    %v260 = vunpack.c.l.b16 %v79
    %v261 = vunpack.c.h.b16 %v79
    %v262 = vunpack.c.l.b16 %v80
    %v263 = vunpack.c.h.b16 %v80
    %v264 = vunpack.c.l.b16 %v81
    %v265 = vunpack.c.h.b16 %v81
    %v266 = vunpack.c.l.b16 %v82
    %v267 = vunpack.c.h.b16 %v82
    %v268 = vunpack.c.l.b16 %v83
    %v269 = vunpack.c.h.b16 %v83
    %v270 = vunpack.c.l.b16 %v84
    %v271 = vunpack.c.h.b16 %v84
    %v272 = vunpack.c.l.b16 %v85
    %v273 = vunpack.c.h.b16 %v85
    %v274 = vunpack.c.l.b16 %v86
    %v275 = vunpack.c.h.b16 %v86
    %v276 = vunpack.c.l.b16 %v87
    %v277 = vunpack.c.h.b16 %v87
    %v278 = vunpack.c.l.b16 %v88
    %v279 = vunpack.c.h.b16 %v88
    %v280 = vunpack.c.l.b16 %v89
    %v281 = vunpack.c.h.b16 %v89
    %v282 = vunpack.c.l.b16 %v90
    %v283 = vunpack.c.h.b16 %v90
    %v284 = vunpack.c.l.b16 %v91
    %v285 = vunpack.c.h.b16 %v91
    %v286 = vunpack.c.l.b16 %v92
    %v287 = vunpack.c.h.b16 %v92
    %v288 = vunpack.c.l.b16 %v93
    %v289 = vunpack.c.h.b16 %v93
    %v290 = vunpack.c.l.b16 %v94
    %v291 = vunpack.c.h.b16 %v94
    %v292 = vunpack.c.l.b16 %v95
    %v293 = vunpack.c.h.b16 %v95
    %v294 = vunpack.c.l.b16 %v96
    %v295 = vunpack.c.h.b16 %v96
    %v296 = vunpack.c.l.b16 %v97
    %v297 = vunpack.c.h.b16 %v97
    %v298 = vunpack.c.l.b16 %v98
    %v299 = vunpack.c.h.b16 %v98
    %v300 = vunpack.c.l.b16 %v99
    %v301 = vunpack.c.h.b16 %v99
    %v302 = vunpack.c.l.b16 %v100
    %v303 = vunpack.c.h.b16 %v100
    %v304 = vunpack.c.l.b16 %v101
    %v305 = vunpack.c.h.b16 %v101
    %v306 = vunpack.c.l.b16 %v102
    %v307 = vunpack.c.h.b16 %v102
    %v308 = vunpack.c.l.b16 %v103
    %v309 = vunpack.c.h.b16 %v103
    %v310 = vunpack.c.l.b16 %v104
    %v311 = vunpack.c.h.b16 %v104
    %v312 = vunpack.c.l.b16 %v105
    %v313 = vunpack.c.h.b16 %v105
    %v314 = vunpack.c.l.b16 %v106
    %v315 = vunpack.c.h.b16 %v106
    %v316 = vunpack.c.l.b16 %v107
    %v317 = vunpack.c.h.b16 %v107
    %v318 = vunpack.c.l.b16 %v108
    %v319 = vunpack.c.h.b16 %v108
    %v320 = vunpack.c.l.b16 %v109
    %v321 = vunpack.c.h.b16 %v109
    %v322 = vunpack.c.l.b16 %v110
    %v323 = vunpack.c.h.b16 %v110
    %v324 = vunpack.c.l.b16 %v111
    %v325 = vunpack.c.h.b16 %v111
    %v326 = vunpack.c.l.b16 %v112
    %v327 = vunpack.c.h.b16 %v112
    %v328 = vunpack.c.l.b16 %v113
    %v329 = vunpack.c.h.b16 %v113
    %v330 = vunpack.c.l.b16 %v114
    %v331 = vunpack.c.h.b16 %v114
    %v332 = vunpack.c.l.b16 %v115
    %v333 = vunpack.c.h.b16 %v115
    %v334 = vunpack.c.l.b16 %v116
    %v335 = vunpack.c.h.b16 %v116
    %v336 = vunpack.c.l.b16 %v117
    %v337 = vunpack.c.h.b16 %v117
    %v338 = vunpack.c.l.b16 %v118
    %v339 = vunpack.c.h.b16 %v118
    %v340 = vunpack.c.l.b16 %v119
    %v341 = vunpack.c.h.b16 %v119
    %v342 = vunpack.c.l.b16 %v120
    %v343 = vunpack.c.h.b16 %v120
    %v344 = vunpack.c.l.b16 %v121
    %v345 = vunpack.c.h.b16 %v121
    %v346 = vpack.c.b16 %v218, %v216
    %v347 = vpack.c.b16 %v219, %v217
    %v348 = vpack.c.b16 %v222, %v220
    %v349 = vpack.c.b16 %v223, %v221
    %v350 = vpack.c.b16 %v226, %v224
    %v351 = vpack.c.b16 %v227, %v225
    %v352 = vpack.c.b16 %v230, %v228
    %v353 = vpack.c.b16 %v231, %v229
    %v354 = vpack.c.b16 %v234, %v232
    %v355 = vpack.c.b16 %v235, %v233
    %v356 = vpack.c.b16 %v238, %v236
    %v357 = vpack.c.b16 %v239, %v237
    %v358 = vpack.c.b16 %v242, %v240
    %v359 = vpack.c.b16 %v243, %v241
    %v360 = vpack.c.b16 %v246, %v244
    %v361 = vpack.c.b16 %v247, %v245
    %v362 = vpack.c.b16 %v250, %v248
    %v363 = vpack.c.b16 %v251, %v249
    %v364 = vpack.c.b16 %v254, %v252
    %v365 = vpack.c.b16 %v255, %v253
    %v366 = vpack.c.b16 %v258, %v256
    %v367 = vpack.c.b16 %v259, %v257
    %v368 = vpack.c.b16 %v262, %v260
    %v369 = vpack.c.b16 %v263, %v261
    %v370 = vpack.c.b16 %v266, %v264
    %v371 = vpack.c.b16 %v267, %v265
    %v372 = vpack.c.b16 %v270, %v268
    %v373 = vpack.c.b16 %v271, %v269
    %v374 = vpack.c.b16 %v274, %v272
    %v375 = vpack.c.b16 %v275, %v273
    %v376 = vpack.c.b16 %v278, %v276
    %v377 = vpack.c.b16 %v279, %v277
    %v378 = vpack.c.b16 %v282, %v280
    %v379 = vpack.c.b16 %v283, %v281
    %v380 = vpack.c.b16 %v286, %v284
    %v381 = vpack.c.b16 %v287, %v285
    %v382 = vpack.c.b16 %v290, %v288
    %v383 = vpack.c.b16 %v291, %v289
    %v384 = vpack.c.b16 %v294, %v292
    %v385 = vpack.c.b16 %v295, %v293
    %v386 = vpack.c.b16 %v298, %v296
    %v387 = vpack.c.b16 %v299, %v297
    %v388 = vpack.c.b16 %v302, %v300
    %v389 = vpack.c.b16 %v303, %v301
    %v390 = vpack.c.b16 %v306, %v304
    %v391 = vpack.c.b16 %v307, %v305
    %v392 = vpack.c.b16 %v310, %v308
    %v393 = vpack.c.b16 %v311, %v309
    %v394 = vpack.c.b16 %v314, %v312
    %v395 = vpack.c.b16 %v315, %v313
    %v396 = vpack.c.b16 %v318, %v316
    %v397 = vpack.c.b16 %v319, %v317
    %v398 = vpack.c.b16 %v322, %v320
    %v399 = vpack.c.b16 %v323, %v321
    %v400 = vpack.c.b16 %v326, %v324
    %v401 = vpack.c.b16 %v327, %v325
    %v402 = vpack.c.b16 %v330, %v328
    %v403 = vpack.c.b16 %v331, %v329
    %v404 = vpack.c.b16 %v334, %v332
    %v405 = vpack.c.b16 %v335, %v333
    %v406 = vpack.c.b16 %v338, %v336
    %v407 = vpack.c.b16 %v339, %v337
    %v408 = vpack.c.b16 %v342, %v340
    %v409 = vpack.c.b16 %v343, %v341
    %v410 = vpack.c.b16 %v344, %v344
    %v411 = vpack.c.b16 %v345, %v345
    %vm476 = vcmask 31744
    %v478 = vsel %vm476, %v146, 0
    %vm480 = vcmask 1041408
    %v482 = vsel %vm480, %v410, 0
    %v485 = vsel %vm480, %v411, 0
    %487 = vmatprep.subr.bf16.mxu0 %v347
    %488 = vmatpush1.bf16.msra.mxu0 %v346
    %489 = vmatprep.subr.bf16.mxu0 %v349
    %490 = vmatpush1.bf16.msra.mxu0 %v348
    %491 = vmatprep.subr.bf16.mxu0 %v351
    %492 = vmatpush1.bf16.msra.mxu0 %v350
    %493 = vmatprep.subr.bf16.mxu0 %v353
    %494 = vmatpush1.bf16.msra.mxu0 %v352
    %495 = vmatprep.subr.bf16.mxu0 %v355
    %496 = vmatpush1.bf16.msra.mxu0 %v354
    %497 = vmatprep.subr.bf16.mxu0 %v357
    %498 = vmatpush1.bf16.msra.mxu0 %v356
    %499 = vmatprep.subr.bf16.mxu0 %v359
    %500 = vmatpush1.bf16.msra.mxu0 %v358
    %501 = vmatprep.subr.bf16.mxu0 %v361
    %502 = vmatpush1.bf16.msra.mxu0 %v360
    %503 = vmatprep.subr.bf16.mxu0 %v363
    %504 = vmatpush1.bf16.msra.mxu0 %v362
    %505 = vmatprep.subr.bf16.mxu0 %v365
    %506 = vmatpush1.bf16.msra.mxu0 %v364
    %507 = vmatprep.subr.bf16.mxu0 %v367
    %508 = vmatpush1.bf16.msra.mxu0 %v366
    %509 = vmatprep.subr.bf16.mxu0 %v369
    %510 = vmatpush1.bf16.msra.mxu0 %v368
    %511 = vmatprep.subr.bf16.mxu0 %v371
    %512 = vmatpush1.bf16.msra.mxu0 %v370
    %513 = vmatprep.subr.bf16.mxu0 %v373
    %514 = vmatpush1.bf16.msra.mxu0 %v372
    %515 = vmatprep.subr.bf16.mxu0 %v375
    %516 = vmatpush1.bf16.msra.mxu0 %v374
    %517 = vmatprep.subr.bf16.mxu0 %v377
    %518 = vmatpush1.bf16.msra.mxu0 %v376
    %519 = vmatprep.mubr.bf16.mxu0 %v143
    %520 = vmatmul.mubr.bf16.gmra.mrb[0].mxu0 %v142
    %v521 = vpop.f32.mrb[0].mxu0
    %v522 = vadd.f32 %v127, %v521
    %v523 = vpop.f32.mrb[0].mxu0
    %v524 = vadd.f32 %v131, %v523
    %v525 = vpop.f32.mrb[0].mxu0
    %v526 = vpop.f32.mrb[0].mxu0
    %527 = vdwg.mxu0
    %528 = vmatprep.subr.bf16.mxu0 %v379
    %529 = vmatpush1.bf16.msra.mxu0 %v378
    %530 = vmatprep.subr.bf16.mxu0 %v381
    %531 = vmatpush1.bf16.msra.mxu0 %v380
    %532 = vmatprep.subr.bf16.mxu0 %v383
    %533 = vmatpush1.bf16.msra.mxu0 %v382
    %534 = vmatprep.subr.bf16.mxu0 %v385
    %535 = vmatpush1.bf16.msra.mxu0 %v384
    %536 = vmatprep.subr.bf16.mxu0 %v387
    %537 = vmatpush1.bf16.msra.mxu0 %v386
    %538 = vmatprep.subr.bf16.mxu0 %v389
    %539 = vmatpush1.bf16.msra.mxu0 %v388
    %540 = vmatprep.subr.bf16.mxu0 %v391
    %541 = vmatpush1.bf16.msra.mxu0 %v390
    %542 = vmatprep.subr.bf16.mxu0 %v393
    %543 = vmatpush1.bf16.msra.mxu0 %v392
    %544 = vmatprep.subr.bf16.mxu0 %v395
    %545 = vmatpush1.bf16.msra.mxu0 %v394
    %546 = vmatprep.subr.bf16.mxu0 %v397
    %547 = vmatpush1.bf16.msra.mxu0 %v396
    %548 = vmatprep.subr.bf16.mxu0 %v399
    %549 = vmatpush1.bf16.msra.mxu0 %v398
    %550 = vmatprep.subr.bf16.mxu0 %v401
    %551 = vmatpush1.bf16.msra.mxu0 %v400
    %552 = vmatprep.subr.bf16.mxu0 %v403
    %553 = vmatpush1.bf16.msra.mxu0 %v402
    %554 = vmatprep.subr.bf16.mxu0 %v405
    %555 = vmatpush1.bf16.msra.mxu0 %v404
    %556 = vmatprep.subr.bf16.mxu0 %v407
    %557 = vmatpush1.bf16.msra.mxu0 %v406
    %558 = vmatprep.subr.bf16.mxu0 %v409
    %559 = vmatpush1.bf16.msra.mxu0 %v408
    %560 = vmatprep.mubr.bf16.mxu0 %v145
    %561 = vmatmul.mubr.bf16.gmra.mrb[0].mxu0 %v144
    %v562 = vpop.f32.mrb[0].mxu0
    %v563 = vadd.f32 %v522, %v562
    %v564 = vpop.f32.mrb[0].mxu0
    %v565 = vadd.f32 %v524, %v564
    %v566 = vpop.f32.mrb[0].mxu0
    %v567 = vpop.f32.mrb[0].mxu0
    %568 = vdwg.mxu0
    %569 = vmatprep.subr.bf16.mxu0 %v485
    %570 = vmatpush1.bf16.msra.mxu0 %v482
    %571 = vmatprep.subr.bf16.mxu0 0
    %572 = vmatpush1.bf16.msra.mxu0 0
    %573 = vmatprep.subr.bf16.mxu0 0
    %574 = vmatpush1.bf16.msra.mxu0 0
    %575 = vmatprep.subr.bf16.mxu0 0
    %576 = vmatpush1.bf16.msra.mxu0 0
    %577 = vmatprep.subr.bf16.mxu0 0
    %578 = vmatpush1.bf16.msra.mxu0 0
    %579 = vmatprep.subr.bf16.mxu0 0
    %580 = vmatpush1.bf16.msra.mxu0 0
    %581 = vmatprep.subr.bf16.mxu0 0
    %582 = vmatpush1.bf16.msra.mxu0 0
    %583 = vmatprep.subr.bf16.mxu0 0
    %584 = vmatpush1.bf16.msra.mxu0 0
    %585 = vmatprep.subr.bf16.mxu0 0
    %586 = vmatpush1.bf16.msra.mxu0 0
    %587 = vmatprep.subr.bf16.mxu0 0
    %588 = vmatpush1.bf16.msra.mxu0 0
    %589 = vmatprep.subr.bf16.mxu0 0
    %590 = vmatpush1.bf16.msra.mxu0 0
    %591 = vmatprep.subr.bf16.mxu0 0
    %592 = vmatpush1.bf16.msra.mxu0 0
    %593 = vmatprep.subr.bf16.mxu0 0
    %594 = vmatpush1.bf16.msra.mxu0 0
    %595 = vmatprep.subr.bf16.mxu0 0
    %596 = vmatpush1.bf16.msra.mxu0 0
    %597 = vmatprep.subr.bf16.mxu0 0
    %598 = vmatpush1.bf16.msra.mxu0 0
    %599 = vmatprep.subr.bf16.mxu0 0
    %600 = vmatpush1.bf16.msra.mxu0 0
    %601 = vmatprep.mubr.bf16.mxu0 0
    %602 = vmatmul.mubr.bf16.gmra.mrb[0].mxu0 %v478
    %v603 = vpop.f32.mrb[0].mxu0
    %v604 = vadd.f32 %v563, %v603
    %v605 = vpop.f32.mrb[0].mxu0
    %v606 = vadd.f32 %v565, %v605
    %v607 = vpop.f32.mrb[0].mxu0
    %v608 = vpop.f32.mrb[0].mxu0
    %609 = vdwg.mxu0
    %v610 = vmax.f32 %v604, 0.0
    %v611 = vmax.f32 %v606, 0.0
    %v612 = vpack.c.bf16 %v610, %v610
    %v613 = vpack.c.bf16 %v611, %v611
    %v614 = vld [vmem:[%s4] sm:$0xf]
    %v615 = vld [vmem:[%s4 + $0x4] sm:$0xf]
    %v616 = vld [vmem:[%s4 + $0x8] sm:$0xf]
    %v617 = vld [vmem:[%s4 + $0xc] sm:$0xf]
    %v618 = vld [vmem:[%s4 + $0x10] sm:$0xf]
    %v619 = vld [vmem:[%s4 + $0x14] sm:$0xf]
    %v620 = vld [vmem:[%s4 + $0x18] sm:$0xf]
    %v621 = vld [vmem:[%s4 + $0x1c] sm:$0xf]
    %v622 = vld [vmem:[%s4 + $0x20] sm:$0xf]
    %v623 = vld [vmem:[%s4 + $0x24] sm:$0xf]
    %v624 = vld [vmem:[%s4 + $0x28] sm:$0xf]
    %v625 = vld [vmem:[%s4 + $0x2c] sm:$0xf]
    %v626 = vld [vmem:[%s4 + $0x30] sm:$0xf]
    %v627 = vld [vmem:[%s4 + $0x34] sm:$0xf]
    %v628 = vld [vmem:[%s4 + $0x38] sm:$0xf]
    %v629 = vld [vmem:[%s4 + $0x3c] sm:$0xf]
    %v630 = vld [vmem:[%s4 + $0x40] sm:$0xf]
    %v631 = vld [vmem:[%s4 + $0x44] sm:$0xf]
    %v632 = vld [vmem:[%s4 + $0x48] sm:$0xf]
    %v633 = vld [vmem:[%s4 + $0x4c] sm:$0xf]
    %v634 = vld [vmem:[%s4 + $0x50] sm:$0xf]
    %v635 = vld [vmem:[%s4 + $0x54] sm:$0xf]
    %v636 = vld [vmem:[%s4 + $0x58] sm:$0xf]
    %v637 = vld [vmem:[%s4 + $0x5c] sm:$0xf]
    %v638 = vld [vmem:[%s4 + $0x60] sm:$0xf]
    %v639 = vld [vmem:[%s4 + $0x64] sm:$0xf]
    %v640 = vld [vmem:[%s4 + $0x68] sm:$0xf]
    %v641 = vld [vmem:[%s4 + $0x6c] sm:$0xf]
    %v642 = vld [vmem:[%s4 + $0x70] sm:$0xf]
    %v643 = vld [vmem:[%s4 + $0x74] sm:$0xf]
    %v644 = vld [vmem:[%s4 + $0x78] sm:$0xf]
    %v645 = vld [vmem:[%s4 + $0x7c] sm:$0xf]
    %v646 = vld [vmem:[%s5] sm:$0x1]
    %v648 = vlaneseq
    %v649 = vshrl.u32 %v648, 7
    %v650 = vsub.s32 0, %v649
    %v651 = vrot.slane %v646, %v650
    %v685 = vunpack.c.l.b16 %v614
    %v686 = vunpack.c.l.b16 %v615
    %v687 = vunpack.c.l.b16 %v616
    %v688 = vunpack.c.l.b16 %v617
    %v689 = vunpack.c.l.b16 %v618
    %v690 = vunpack.c.l.b16 %v619
    %v691 = vunpack.c.l.b16 %v620
    %v692 = vunpack.c.l.b16 %v621
    %v693 = vunpack.c.l.b16 %v622
    %v694 = vunpack.c.l.b16 %v623
    %v695 = vunpack.c.l.b16 %v624
    %v696 = vunpack.c.l.b16 %v625
    %v697 = vunpack.c.l.b16 %v626
    %v698 = vunpack.c.l.b16 %v627
    %v699 = vunpack.c.l.b16 %v628
    %v700 = vunpack.c.l.b16 %v629
    %v701 = vunpack.c.l.b16 %v630
    %v702 = vunpack.c.l.b16 %v631
    %v703 = vunpack.c.l.b16 %v632
    %v704 = vunpack.c.l.b16 %v633
    %v705 = vunpack.c.l.b16 %v634
    %v706 = vunpack.c.l.b16 %v635
    %v707 = vunpack.c.l.b16 %v636
    %v708 = vunpack.c.l.b16 %v637
    %v709 = vunpack.c.l.b16 %v638
    %v710 = vunpack.c.l.b16 %v639
    %v711 = vunpack.c.l.b16 %v640
    %v712 = vunpack.c.l.b16 %v641
    %v713 = vunpack.c.l.b16 %v642
    %v714 = vunpack.c.l.b16 %v643
    %v715 = vunpack.c.l.b16 %v644
    %v716 = vunpack.c.l.b16 %v645
    %v717 = vpack.c.b16 %v686, %v685
    %v718 = vpack.c.b16 %v688, %v687
    %v719 = vpack.c.b16 %v690, %v689
    %v720 = vpack.c.b16 %v692, %v691
    %v721 = vpack.c.b16 %v694, %v693
    %v722 = vpack.c.b16 %v696, %v695
    %v723 = vpack.c.b16 %v698, %v697
    %v724 = vpack.c.b16 %v700, %v699
    %v725 = vpack.c.b16 %v702, %v701
    %v726 = vpack.c.b16 %v704, %v703
    %v727 = vpack.c.b16 %v706, %v705
    %v728 = vpack.c.b16 %v708, %v707
    %v729 = vpack.c.b16 %v710, %v709
    %v730 = vpack.c.b16 %v712, %v711
    %v731 = vpack.c.b16 %v714, %v713
    %v732 = vpack.c.b16 %v716, %v715
    %749 = vmatprep.subr.bf16.mxu0 0
    %750 = vmatpush1.bf16.msra.mxu0 %v717
    %751 = vmatprep.subr.bf16.mxu0 0
    %752 = vmatpush1.bf16.msra.mxu0 %v718
    %753 = vmatprep.subr.bf16.mxu0 0
    %754 = vmatpush1.bf16.msra.mxu0 %v719
    %755 = vmatprep.subr.bf16.mxu0 0
    %756 = vmatpush1.bf16.msra.mxu0 %v720
    %757 = vmatprep.subr.bf16.mxu0 0
    %758 = vmatpush1.bf16.msra.mxu0 %v721
    %759 = vmatprep.subr.bf16.mxu0 0
    %760 = vmatpush1.bf16.msra.mxu0 %v722
    %761 = vmatprep.subr.bf16.mxu0 0
    %762 = vmatpush1.bf16.msra.mxu0 %v723
    %763 = vmatprep.subr.bf16.mxu0 0
    %764 = vmatpush1.bf16.msra.mxu0 %v724
    %765 = vmatprep.subr.bf16.mxu0 0
    %766 = vmatpush1.bf16.msra.mxu0 %v725
    %767 = vmatprep.subr.bf16.mxu0 0
    %768 = vmatpush1.bf16.msra.mxu0 %v726
    %769 = vmatprep.subr.bf16.mxu0 0
    %770 = vmatpush1.bf16.msra.mxu0 %v727
    %771 = vmatprep.subr.bf16.mxu0 0
    %772 = vmatpush1.bf16.msra.mxu0 %v728
    %773 = vmatprep.subr.bf16.mxu0 0
    %774 = vmatpush1.bf16.msra.mxu0 %v729
    %775 = vmatprep.subr.bf16.mxu0 0
    %776 = vmatpush1.bf16.msra.mxu0 %v730
    %777 = vmatprep.subr.bf16.mxu0 0
    %778 = vmatpush1.bf16.msra.mxu0 %v731
    %779 = vmatprep.subr.bf16.mxu0 0
    %780 = vmatpush1.bf16.msra.mxu0 %v732
    %781 = vmatprep.mubr.bf16.mxu0 %v613
    %782 = vmatmul.mubr.bf16.gmra.mrb[0].mxu0 %v612
    %v783 = vpop.f32.mrb[0].mxu0
    %v784 = vadd.f32 %v651, %v783
    %v785 = vpop.f32.mrb[0].mxu0
    %v786 = vpop.f32.mrb[0].mxu0
    %v787 = vpop.f32.mrb[0].mxu0
    %788 = vdwg.mxu0
    %v789 = vld [vmem:[%s1] sm:$0xff]
    %v790 = vmul.f32 %v784, 0.5
    %v791 = vmul.f32 %v790, 1.442695
    %v792 = vpow.pop %v791
    %794 = vrot.lane.b32.xlu0 %v792, 112
    %v795 = vpop.permute.xlu0 %794
    %v797 = vmul.f32 %v789, %v795
    %v798 = vadd.f32 %v797, %v784
    %v799 = vpack.c.bf16 %v798, %v798
    %v800 = vld [vmem:[%s6] sm:$0xf]
    %v801 = vld [vmem:[%s6 + $0x4] sm:$0xf]
    %v802 = vpack.c.bf16 %v789, %v789
    %v803 = vld [vmem:[%s7] sm:$0xf]
    %v804 = vld [vmem:[%s7 + $0x4] sm:$0xf]
    %806 = vrot.lane.b32.xlu0 %v802, 112
    %v807 = vpop.permute.xlu0 %806
    %v810 = vunpack.c.l.b16 %v803
    %v811 = vunpack.c.l.b16 %v804
    %v812 = vpack.c.b16 %v811, %v810
    %vm814 = vcmask 130048
    %v816 = vsel %vm814, %v807, 0
    %818 = vmatprep.subr.bf16.mxu0 0
    %819 = vmatpush1.bf16.msra.mxu0 %v812
    %820 = vmatprep.subr.bf16.mxu0 0
    %821 = vmatpush1.bf16.msra.mxu0 0
    %822 = vmatprep.subr.bf16.mxu0 0
    %823 = vmatpush1.bf16.msra.mxu0 0
    %824 = vmatprep.subr.bf16.mxu0 0
    %825 = vmatpush1.bf16.msra.mxu0 0
    %826 = vmatprep.subr.bf16.mxu0 0
    %827 = vmatpush1.bf16.msra.mxu0 0
    %828 = vmatprep.subr.bf16.mxu0 0
    %829 = vmatpush1.bf16.msra.mxu0 0
    %830 = vmatprep.subr.bf16.mxu0 0
    %831 = vmatpush1.bf16.msra.mxu0 0
    %832 = vmatprep.subr.bf16.mxu0 0
    %833 = vmatpush1.bf16.msra.mxu0 0
    %834 = vmatprep.subr.bf16.mxu0 0
    %835 = vmatpush1.bf16.msra.mxu0 0
    %836 = vmatprep.subr.bf16.mxu0 0
    %837 = vmatpush1.bf16.msra.mxu0 0
    %838 = vmatprep.subr.bf16.mxu0 0
    %839 = vmatpush1.bf16.msra.mxu0 0
    %840 = vmatprep.subr.bf16.mxu0 0
    %841 = vmatpush1.bf16.msra.mxu0 0
    %842 = vmatprep.subr.bf16.mxu0 0
    %843 = vmatpush1.bf16.msra.mxu0 0
    %844 = vmatprep.subr.bf16.mxu0 0
    %845 = vmatpush1.bf16.msra.mxu0 0
    %846 = vmatprep.subr.bf16.mxu0 0
    %847 = vmatpush1.bf16.msra.mxu0 0
    %848 = vmatprep.subr.bf16.mxu0 0
    %849 = vmatpush1.bf16.msra.mxu0 0
    %850 = vmatprep.mubr.bf16.mxu0 0
    %851 = vmatmul.mubr.bf16.gmra.mrb[0].mxu0 %v816
    %v852 = vpop.f32.mrb[0].mxu0
    %v853 = vadd.f32 0.0, %v852
    %v854 = vpop.f32.mrb[0].mxu0
    %v855 = vpop.f32.mrb[0].mxu0
    %v856 = vpop.f32.mrb[0].mxu0
    %857 = vdwg.mxu0
    %v860 = vunpack.c.l.b16 %v800
    %v861 = vunpack.c.l.b16 %v801
    %v862 = vpack.c.b16 %v861, %v860
    %v865 = vsel %vm814, %v799, 0
    %867 = vmatprep.subr.bf16.mxu0 0
    %868 = vmatpush1.bf16.msra.mxu0 %v862
    %869 = vmatprep.subr.bf16.mxu0 0
    %870 = vmatpush1.bf16.msra.mxu0 0
    %871 = vmatprep.subr.bf16.mxu0 0
    %872 = vmatpush1.bf16.msra.mxu0 0
    %873 = vmatprep.subr.bf16.mxu0 0
    %874 = vmatpush1.bf16.msra.mxu0 0
    %875 = vmatprep.subr.bf16.mxu0 0
    %876 = vmatpush1.bf16.msra.mxu0 0
    %877 = vmatprep.subr.bf16.mxu0 0
    %878 = vmatpush1.bf16.msra.mxu0 0
    %879 = vmatprep.subr.bf16.mxu0 0
    %880 = vmatpush1.bf16.msra.mxu0 0
    %881 = vmatprep.subr.bf16.mxu0 0
    %882 = vmatpush1.bf16.msra.mxu0 0
    %883 = vmatprep.subr.bf16.mxu0 0
    %884 = vmatpush1.bf16.msra.mxu0 0
    %885 = vmatprep.subr.bf16.mxu0 0
    %886 = vmatpush1.bf16.msra.mxu0 0
    %887 = vmatprep.subr.bf16.mxu0 0
    %888 = vmatpush1.bf16.msra.mxu0 0
    %889 = vmatprep.subr.bf16.mxu0 0
    %890 = vmatpush1.bf16.msra.mxu0 0
    %891 = vmatprep.subr.bf16.mxu0 0
    %892 = vmatpush1.bf16.msra.mxu0 0
    %893 = vmatprep.subr.bf16.mxu0 0
    %894 = vmatpush1.bf16.msra.mxu0 0
    %895 = vmatprep.subr.bf16.mxu0 0
    %896 = vmatpush1.bf16.msra.mxu0 0
    %897 = vmatprep.subr.bf16.mxu0 0
    %898 = vmatpush1.bf16.msra.mxu0 0
    %899 = vmatprep.mubr.bf16.mxu0 0
    %900 = vmatmul.mubr.bf16.gmra.mrb[0].mxu0 %v865
    %v901 = vpop.f32.mrb[0].mxu0
    %v902 = vadd.f32 %v853, %v901
    %v903 = vpop.f32.mrb[0].mxu0
    %v904 = vpop.f32.mrb[0].mxu0
    %v905 = vpop.f32.mrb[0].mxu0
    %906 = vdwg.mxu0
    %v907 = vld [vmem:[%s8] sm:$0x1]
    %v909 = vlaneseq
    %v910 = vshrl.u32 %v909, 7
    %v911 = vsub.s32 0, %v910
    %v912 = vrot.slane %v907, %v911
    %v914 = vadd.f32 %v902, %v912
    %v915 = vmax.f32 %v914, 0.0
    %v916 = vpack.c.bf16 %v915, %v915
    %v917 = vld [vmem:[%s9] sm:$0xff]
    %v918 = vld [vmem:[%s9 + $0x8] sm:$0xff]
    %v919 = vld [vmem:[%s9 + $0x10] sm:$0xff]
    %v920 = vld [vmem:[%s9 + $0x18] sm:$0xff]
    %v921 = vld [vmem:[%s9 + $0x20] sm:$0xff]
    %v922 = vld [vmem:[%s9 + $0x28] sm:$0xff]
    %v923 = vld [vmem:[%s9 + $0x30] sm:$0xff]
    %v924 = vld [vmem:[%s9 + $0x38] sm:$0xff]
    %v925 = vld [vmem:[%s9 + $0x40] sm:$0xff]
    %v926 = vld [vmem:[%s9 + $0x48] sm:$0xff]
    %v927 = vld [vmem:[%s9 + $0x50] sm:$0xff]
    %v928 = vld [vmem:[%s9 + $0x58] sm:$0xff]
    %v929 = vld [vmem:[%s9 + $0x60] sm:$0xff]
    %v930 = vld [vmem:[%s9 + $0x68] sm:$0xff]
    %v931 = vld [vmem:[%s9 + $0x70] sm:$0xff]
    %v932 = vld [vmem:[%s9 + $0x78] sm:$0xff]
    %v933 = vld [vmem:[%s10] sm:$0x3]
    %v935 = vlaneseq
    %v936 = vshrl.u32 %v935, 7
    %v937 = vsub.s32 0, %v936
    %v938 = vrot.slane %v933, %v937
    %v939 = vlaneseq
    %v940 = vshrl.u32 %v939, 7
    %v941 = vsub.s32 1, %v940
    %v942 = vrot.slane %v933, %v941
    %v961 = vunpack.c.l.b16 %v917
    %v962 = vunpack.c.h.b16 %v917
    %v963 = vunpack.c.l.b16 %v918
    %v964 = vunpack.c.h.b16 %v918
    %v965 = vunpack.c.l.b16 %v919
    %v966 = vunpack.c.h.b16 %v919
    %v967 = vunpack.c.l.b16 %v920
    %v968 = vunpack.c.h.b16 %v920
    %v969 = vunpack.c.l.b16 %v921
    %v970 = vunpack.c.h.b16 %v921
    %v971 = vunpack.c.l.b16 %v922
    %v972 = vunpack.c.h.b16 %v922
    %v973 = vunpack.c.l.b16 %v923
    %v974 = vunpack.c.h.b16 %v923
    %v975 = vunpack.c.l.b16 %v924
    %v976 = vunpack.c.h.b16 %v924
    %v977 = vunpack.c.l.b16 %v925
    %v978 = vunpack.c.h.b16 %v925
    %v979 = vunpack.c.l.b16 %v926
    %v980 = vunpack.c.h.b16 %v926
    %v981 = vunpack.c.l.b16 %v927
    %v982 = vunpack.c.h.b16 %v927
    %v983 = vunpack.c.l.b16 %v928
    %v984 = vunpack.c.h.b16 %v928
    %v985 = vunpack.c.l.b16 %v929
    %v986 = vunpack.c.h.b16 %v929
    %v987 = vunpack.c.l.b16 %v930
    %v988 = vunpack.c.h.b16 %v930
    %v989 = vunpack.c.l.b16 %v931
    %v990 = vunpack.c.h.b16 %v931
    %v991 = vunpack.c.l.b16 %v932
    %v992 = vunpack.c.h.b16 %v932
    %v993 = vpack.c.b16 %v963, %v961
    %v994 = vpack.c.b16 %v964, %v962
    %v995 = vpack.c.b16 %v967, %v965
    %v996 = vpack.c.b16 %v968, %v966
    %v997 = vpack.c.b16 %v971, %v969
    %v998 = vpack.c.b16 %v972, %v970
    %v999 = vpack.c.b16 %v975, %v973
    %v1000 = vpack.c.b16 %v976, %v974
    %v1001 = vpack.c.b16 %v979, %v977
    %v1002 = vpack.c.b16 %v980, %v978
    %v1003 = vpack.c.b16 %v983, %v981
    %v1004 = vpack.c.b16 %v984, %v982
    %v1005 = vpack.c.b16 %v987, %v985
    %v1006 = vpack.c.b16 %v988, %v986
    %v1007 = vpack.c.b16 %v991, %v989
    %v1008 = vpack.c.b16 %v992, %v990
    %1025 = vmatprep.subr.bf16.mxu0 %v994
    %1026 = vmatpush1.bf16.msra.mxu0 %v993
    %1027 = vmatprep.subr.bf16.mxu0 %v996
    %1028 = vmatpush1.bf16.msra.mxu0 %v995
    %1029 = vmatprep.subr.bf16.mxu0 %v998
    %1030 = vmatpush1.bf16.msra.mxu0 %v997
    %1031 = vmatprep.subr.bf16.mxu0 %v1000
    %1032 = vmatpush1.bf16.msra.mxu0 %v999
    %1033 = vmatprep.subr.bf16.mxu0 %v1002
    %1034 = vmatpush1.bf16.msra.mxu0 %v1001
    %1035 = vmatprep.subr.bf16.mxu0 %v1004
    %1036 = vmatpush1.bf16.msra.mxu0 %v1003
    %1037 = vmatprep.subr.bf16.mxu0 %v1006
    %1038 = vmatpush1.bf16.msra.mxu0 %v1005
    %1039 = vmatprep.subr.bf16.mxu0 %v1008
    %1040 = vmatpush1.bf16.msra.mxu0 %v1007
    %1041 = vmatprep.subr.bf16.mxu0 0
    %1042 = vmatpush1.bf16.msra.mxu0 0
    %1043 = vmatprep.subr.bf16.mxu0 0
    %1044 = vmatpush1.bf16.msra.mxu0 0
    %1045 = vmatprep.subr.bf16.mxu0 0
    %1046 = vmatpush1.bf16.msra.mxu0 0
    %1047 = vmatprep.subr.bf16.mxu0 0
    %1048 = vmatpush1.bf16.msra.mxu0 0
    %1049 = vmatprep.subr.bf16.mxu0 0
    %1050 = vmatpush1.bf16.msra.mxu0 0
    %1051 = vmatprep.subr.bf16.mxu0 0
    %1052 = vmatpush1.bf16.msra.mxu0 0
    %1053 = vmatprep.subr.bf16.mxu0 0
    %1054 = vmatpush1.bf16.msra.mxu0 0
    %1055 = vmatprep.subr.bf16.mxu0 0
    %1056 = vmatpush1.bf16.msra.mxu0 0
    %1057 = vmatprep.mubr.bf16.mxu0 0
    %1058 = vmatmul.mubr.bf16.gmra.mrb[0].mxu0 %v916
    %v1059 = vpop.f32.mrb[0].mxu0
    %v1060 = vadd.f32 %v938, %v1059
    %v1061 = vpop.f32.mrb[0].mxu0
    %v1062 = vadd.f32 %v942, %v1061
    %v1063 = vpop.f32.mrb[0].mxu0
    %v1064 = vpop.f32.mrb[0].mxu0
    %1065 = vdwg.mxu0
    %v1066 = vpack.c.bf16 %v1060, %v1060
    %v1067 = vpack.c.bf16 %v1062, %v1062
    %v1070 = vunpack.c.l.b16 %v1066
    %v1071 = vunpack.c.l.b16 %v1067
    %v1072 = vpack.c.b16 %v1071, %v1070
    %1074 = vst [vmem:[#allocation5] sm:$0xff] %v1072
    // Predicated region
    $region50: #{tpu_custom_call.1} parent=1 // pred_check
      _
    $region51: #{tpu_custom_call.1} parent=1 // pred_check_branch
      %1076 = sbr.rel (0) target = $region53
    $region52: #{tpu_custom_call.1} parent=1 // pred_region
      %s1078 = ssub.s32 128, 128
      %1079 = vsyncadd [#allocation4], %s1078
      %s1081 = sshll.u32 [#allocation5], 4
      %s1082 = int_to_ptr.vmem [resolvable:$true] %s1081
      %1084 = dma.vmem_to_hbm [thread:$0]  %s1082, 128, %s11, [#allocation4]
    $region53: #{tpu_custom_call.1} parent=1 // pred_fallthru
      _
    // Predicated region
    $region54: #{tpu_custom_call.1} parent=1 // pred_check
      _
    $region55: #{tpu_custom_call.1} parent=1 // pred_check_branch
      %1086 = sbr.rel (0) target = $region57
    $region56: #{tpu_custom_call.1} parent=1 // pred_region
      %1087 = dma.done [#allocation4], 128
    $region57: #{tpu_custom_call.1} parent=1 // pred_fallthru
      _
    %1088 = vsyncpa [#allocation3], 1
    %1089 = vsyncpa [#allocation4], 1

</llo_original>
